<compile_context>
chip_gen: v7x
topology: tpu7x:2x2x1
jax: 0.10.0
libtpu: 0.0.40
codegen_flags: <defaults>
</compile_context>

<pallas_src>
import functools
import math

import jax
import jax.numpy as jnp
from jax import lax
from jax.experimental import pallas as pl
from jax.experimental.pallas import tpu as pltpu

EPS = 1e-5  # nn.InstanceNorm2d default eps

# TODO(synk): use_dropout=True path (nn.Dropout(0.5)) not implemented; this
# kernel fixes use_dropout=False as in the default CycleGAN configuration.
# TODO(synk): only padding_style='reflect' is implemented ('replicate'/'zero'
# would only change the boundary jnp.where selects).
# TODO(synk): for large H*W (v7x 64 MiB VMEM budget) add an H-row-tile grid
# axis with a 1-row halo; at these shapes one spatial block per group is best.


def resnet_block_kernel(x_ref, a1_ref, a2_ref, o_ref, patch_ref, *, H, W, rows):
    """One group of images in a channel-planar, lane-dense layout.

    x_ref/o_ref: (rows, H*W) f32, rows = GROUP_N*C  (one row per (n, c) plane)
    a*_ref:      (rows, 9*rows) MXU dtype           (block-diag 3x3 mixing)
    patch_ref:   (9*rows, H*W) MXU dtype VMEM scratch (9 shifted taps)
    """
    P = H * W
    x = x_ref[...]

    # Boundary masks, built ONCE at full (rows, P) and reused by both convs.
    # Lane p = h*W + w.
    lane = lax.broadcasted_iota(jnp.int32, (rows, P), 1)
    at_w0 = (lane % W) == 0
    at_wE = (lane % W) == (W - 1)
    at_h0 = lane < W
    at_hE = lane >= (H - 1) * W

    def _roll(v, s):
        # out[:, p] = v[:, (p - s) % P]  (jnp.roll semantics; XLU lane rotate)
        return pltpu.roll(v, shift=s % P, axis=1)

    def conv3x3(inp, a_ref):
        # Reflect-padded 3x3 conv (bias dropped: cancelled by InstanceNorm) as
        # ONE fused MXU matmul over 9 shifted taps staged in VMEM scratch.
        xm1 = _roll(inp, 1)    # value at w-1
        xp1 = _roll(inp, -1)   # value at w+1
        cols = (
            jnp.where(at_w0, xp1, xm1),   # dx = -1 (reflect at w == 0)
            inp,                          # dx =  0
            jnp.where(at_wE, xm1, xp1),   # dx = +1 (reflect at w == W-1)
        )
        for dx_idx, c in enumerate(cols):
            cu = _roll(c, W)    # value at h-1
            cd = _roll(c, -W)   # value at h+1
            taps = (
                jnp.where(at_h0, cd, cu),   # dy = -1 (reflect at h == 0)
                c,                          # dy =  0
                jnp.where(at_hE, cu, cd),   # dy = +1 (reflect at h == H-1)
            )
            for dy_idx, tap in enumerate(taps):
                t = dy_idx * 3 + dx_idx     # matches A's column-block order
                # rows-multiple sublane offset, full lanes -> unmasked stores.
                patch_ref[pl.ds(t * rows, rows), :] = tap.astype(patch_ref.dtype)
        return jnp.dot(a_ref[...], patch_ref[...],
                       preferred_element_type=jnp.float32)

    def instance_norm(v):
        # Single pass; clamp the variance against negative cancellation.
        mean = jnp.mean(v, axis=1, keepdims=True)
        mean_sq = jnp.mean(v * v, axis=1, keepdims=True)
        var = jnp.maximum(mean_sq - mean * mean, 0.0)
        return (v - mean) * lax.rsqrt(var + EPS)

    h = jnp.maximum(instance_norm(conv3x3(x, a1_ref)), 0.0)   # ReLU
    h = instance_norm(conv3x3(h, a2_ref))
    o_ref[...] = (x + h).astype(o_ref.dtype)                  # residual add


def _mix_matrix(w_hwio, group_n):
    """(3,3,Cin,Cout) HWIO conv weight -> (G*C, 9*G*C) block-diag mix matrix.

    Block t = (ky,kx) is kron(I_G, W[ky,kx]^T), so
      (A @ patches)[g*C+co, p] = sum_{t,ci} W_t[ci,co] * tap_t[g*C+ci, p].
    G is bounded by the 8-sublane tile (G = gcd(N, 8 // C)), so this stays
    O(1) in batch; for C >= 8 it is just the plain (C, 9C) matrix (no kron).
    """
    eye_g = jnp.eye(group_n, dtype=w_hwio.dtype)
    blocks = [jnp.kron(eye_g, w_hwio[ky, kx].T)
              for ky in range(3) for kx in range(3)]
    return jnp.concatenate(blocks, axis=1)


def resnet_block(x_nchw, w1, w2, *, mxu_dtype=jnp.bfloat16):
    """x_nchw: (N, C, H, W); w: (3, 3, C, C) [HWIO].

    Conv biases are intentionally not taken: with affine=False InstanceNorm
    right after each conv they cancel exactly (the biased reference below
    still matches).
    """
    N, C, H, W = x_nchw.shape
    P = H * W
    assert H >= 2 and W >= 2, "reflection padding needs H, W >= 2"
    assert P % 128 == 0, (
        "H*W must be a multiple of 128 for lane-dense unmasked loads/stores; "
        "pad spatially in the caller otherwise")

    # Group images so each grid step works on a sublane-full (rows, P) block.
    group_n = math.gcd(N, max(1, 8 // C))
    rows = group_n * C
    num_groups = N // group_n
    assert rows % 8 == 0 or num_groups == 1, (
        "per-group row count must be a multiple of 8 unless there is a single "
        "group (BlockSpec sublane rule)")

    x2d = x_nchw.reshape(N * C, P)                 # free row-major reshape
    a1 = _mix_matrix(w1, group_n).astype(mxu_dtype)
    a2 = _mix_matrix(w2, group_n).astype(mxu_dtype)

    kernel = functools.partial(resnet_block_kernel, H=H, W=W, rows=rows)
    out2d = pl.pallas_call(
        kernel,
        out_shape=jax.ShapeDtypeStruct((N * C, P), x_nchw.dtype),
        grid_spec=pltpu.PrefetchScalarGridSpec(
            num_scalar_prefetch=0,
            grid=(num_groups,),                    # batch groups
            in_specs=[
                pl.BlockSpec((rows, P), lambda g: (g, 0)),
                pl.BlockSpec((rows, 9 * rows), lambda g: (0, 0)),
                pl.BlockSpec((rows, 9 * rows), lambda g: (0, 0)),
            ],
            out_specs=pl.BlockSpec((rows, P), lambda g: (g, 0)),
            scratch_shapes=[pltpu.VMEM((9 * rows, P), mxu_dtype)],
        ),
        compiler_params=pltpu.CompilerParams(
            dimension_semantics=("parallel",),     # both TCs on v7x when N grows
            vmem_limit_bytes=32 * 1024 * 1024),
    )(x2d, a1, a2)
    return out2d.reshape(N, C, H, W)


def reference_nchw(x_nchw, w1, b1, w2, b2):
    # Pure-JAX reference matching the PyTorch module exactly (reflect pad,
    # biased conv, InstanceNorm, ReLU, residual).
    def conv(a, w, b):
        a = jnp.pad(a, ((0, 0), (0, 0), (1, 1), (1, 1)), mode="reflect")
        y = lax.conv_general_dilated(
            a, w, window_strides=(1, 1), padding="VALID",
            dimension_numbers=("NCHW", "HWIO", "NCHW"))
        return y + b[None, :, None, None]

    def inorm(a):
        m = a.mean(axis=(2, 3), keepdims=True)
        v = ((a - m) ** 2).mean(axis=(2, 3), keepdims=True)
        return (a - m) * lax.rsqrt(v + EPS)

    h = jnp.maximum(inorm(conv(x_nchw, w1, b1)), 0.0)
    h = inorm(conv(h, w2, b2))
    return x_nchw + h


if __name__ == "__main__":
    N, C, H, W = 2, 4, 16, 16  # small shapes consistent with the module (dim=C)

    key = jax.random.PRNGKey(0)
    kx, kw1, kb1, kw2, kb2 = jax.random.split(key, 5)
    x_nchw = jax.random.normal(kx, (N, C, H, W), dtype=jnp.float32)
    # Conv2d(dim, dim, 3, bias=True) weights, stored HWIO: (3, 3, Cin, Cout)
    w1 = 0.1 * jax.random.normal(kw1, (3, 3, C, C), dtype=jnp.float32)
    b1 = 0.1 * jax.random.normal(kb1, (C,), dtype=jnp.float32)
    w2 = 0.1 * jax.random.normal(kw2, (3, 3, C, C), dtype=jnp.float32)
    b2 = 0.1 * jax.random.normal(kb2, (C,), dtype=jnp.float32)

    ref = reference_nchw(x_nchw, w1, b1, w2, b2)  # biased, PyTorch-equivalent

    # f32 MXU operands: tight check of the structure (reflect pad, conv order,
    # IN, ReLU, residual) and of the bias-cancellation claim.
    out_f32 = resnet_block(x_nchw, w1, w2, mxu_dtype=jnp.float32)
    jax.block_until_ready(out_f32)
    err_f32 = float(jnp.max(jnp.abs(out_f32 - ref)))
    assert err_f32 < 1e-4, f"f32 path mismatch vs reference: {err_f32}"

    # bf16 MXU operands (default / production setting per perf review);
    # InstanceNorm renormalizes, so only bf16-rounding-scale error remains.
    out_bf16 = resnet_block(x_nchw, w1, w2)
    jax.block_until_ready(out_bf16)
    assert jnp.allclose(out_bf16, ref, atol=2e-2, rtol=2e-2), (
        "bf16 path mismatch vs reference: max abs err "
        f"{float(jnp.max(jnp.abs(out_bf16 - ref)))}")

    print("KERNEL_OK")
</pallas_src>

<mosaic_0001>
module attributes {stable_mosaic.version = 11 : i64} {
  func.func @resnet_block_kernel(%arg0: i32, %arg1: memref<8x256xf32, #tpu.memory_space<vmem>>, %arg2: memref<8x72xf32, #tpu.memory_space<vmem>>, %arg3: memref<8x72xf32, #tpu.memory_space<vmem>>, %arg4: memref<8x256xf32, #tpu.memory_space<vmem>>, %arg5: memref<72x256xf32, #tpu.memory_space<vmem>>) attributes {dimension_semantics = [#tpu.dimension_semantics<parallel>], iteration_bounds = array<i64: 1>, scalar_prefetch = 0 : i64, scratch_operands = 1 : i64, tpu.core_type = #tpu.core_type<tc>, window_params = [{transform_indices = @transform_0, window_bounds = array<i64: 8, 256>}, {pipeline_mode = #tpu.pipeline_mode<synchronous>, transform_indices = @transform_1, window_bounds = array<i64: 8, 72>}, {pipeline_mode = #tpu.pipeline_mode<synchronous>, transform_indices = @transform_2, window_bounds = array<i64: 8, 72>}, {transform_indices = @transform_3, window_bounds = array<i64: 8, 256>}]} {
    %c0 = arith.constant 0 : index
    %c0_0 = arith.constant 0 : index
    %0 = vector.load %arg1[%c0, %c0_0] : memref<8x256xf32, #tpu.memory_space<vmem>>, vector<8x256xf32>
    %1 = tpu.iota {dimensions = array<i32: 1>} : vector<8x256xi32>
    %c16_i32 = arith.constant 16 : i32
    %c0_i32 = arith.constant 0 : i32
    %2 = arith.cmpi eq, %c16_i32, %c0_i32 : i32
    %c1_i32 = arith.constant 1 : i32
    %3 = arith.select %2, %c1_i32, %c16_i32 : i32
    %4 = vector.broadcast %3 : i32 to vector<8x256xi32>
    %5 = arith.remsi %1, %4 : vector<8x256xi32>
    %c0_i32_1 = arith.constant 0 : i32
    %6 = vector.broadcast %c0_i32_1 : i32 to vector<8x256xi32>
    %7 = arith.cmpi ne, %5, %6 : vector<8x256xi32>
    %c0_i32_2 = arith.constant 0 : i32
    %8 = vector.broadcast %c0_i32_2 : i32 to vector<8x256xi32>
    %9 = arith.cmpi slt, %5, %8 : vector<8x256xi32>
    %c0_i32_3 = arith.constant 0 : i32
    %10 = arith.cmpi slt, %3, %c0_i32_3 : i32
    %11 = vector.broadcast %10 : i1 to vector<8x256xi1>
    %12 = vector.broadcast %11 : vector<8x256xi1> to vector<8x256xi1>
    %13 = arith.xori %9, %12 : vector<8x256xi1>
    %14 = arith.andi %13, %7 : vector<8x256xi1>
    %15 = vector.broadcast %3 : i32 to vector<8x256xi32>
    %16 = arith.addi %5, %15 : vector<8x256xi32>
    %17 = arith.select %14, %16, %5 : vector<8x256xi1>, vector<8x256xi32>
    %c0_i32_4 = arith.constant 0 : i32
    %18 = vector.broadcast %c0_i32_4 : i32 to vector<8x256xi32>
    %19 = arith.cmpi eq, %17, %18 : vector<8x256xi32>
    %c16_i32_5 = arith.constant 16 : i32
    %c0_i32_6 = arith.constant 0 : i32
    %20 = arith.cmpi eq, %c16_i32_5, %c0_i32_6 : i32
    %c1_i32_7 = arith.constant 1 : i32
    %21 = arith.select %20, %c1_i32_7, %c16_i32_5 : i32
    %22 = vector.broadcast %21 : i32 to vector<8x256xi32>
    %23 = arith.remsi %1, %22 : vector<8x256xi32>
    %c0_i32_8 = arith.constant 0 : i32
    %24 = vector.broadcast %c0_i32_8 : i32 to vector<8x256xi32>
    %25 = arith.cmpi ne, %23, %24 : vector<8x256xi32>
    %c0_i32_9 = arith.constant 0 : i32
    %26 = vector.broadcast %c0_i32_9 : i32 to vector<8x256xi32>
    %27 = arith.cmpi slt, %23, %26 : vector<8x256xi32>
    %c0_i32_10 = arith.constant 0 : i32
    %28 = arith.cmpi slt, %21, %c0_i32_10 : i32
    %29 = vector.broadcast %28 : i1 to vector<8x256xi1>
    %30 = vector.broadcast %29 : vector<8x256xi1> to vector<8x256xi1>
    %31 = arith.xori %27, %30 : vector<8x256xi1>
    %32 = arith.andi %31, %25 : vector<8x256xi1>
    %33 = vector.broadcast %21 : i32 to vector<8x256xi32>
    %34 = arith.addi %23, %33 : vector<8x256xi32>
    %35 = arith.select %32, %34, %23 : vector<8x256xi1>, vector<8x256xi32>
    %c15_i32 = arith.constant 15 : i32
    %36 = vector.broadcast %c15_i32 : i32 to vector<8x256xi32>
    %37 = arith.cmpi eq, %35, %36 : vector<8x256xi32>
    %c16_i32_11 = arith.constant 16 : i32
    %38 = vector.broadcast %c16_i32_11 : i32 to vector<8x256xi32>
    %39 = arith.cmpi slt, %1, %38 : vector<8x256xi32>
    %c240_i32 = arith.constant 240 : i32
    %40 = vector.broadcast %c240_i32 : i32 to vector<8x256xi32>
    %41 = arith.cmpi sge, %1, %40 : vector<8x256xi32>
    %c1_i32_12 = arith.constant 1 : i32
    %42 = tpu.dynamic_rotate %0 by %c1_i32_12 dim 1 : vector<8x256xf32>, i32 -> vector<8x256xf32>
    %c255_i32 = arith.constant 255 : i32
    %43 = tpu.dynamic_rotate %0 by %c255_i32 dim 1 : vector<8x256xf32>, i32 -> vector<8x256xf32>
    %44 = arith.select %19, %43, %42 : vector<8x256xi1>, vector<8x256xf32>
    %45 = arith.select %37, %42, %43 : vector<8x256xi1>, vector<8x256xf32>
    %c16_i32_13 = arith.constant 16 : i32
    %46 = tpu.dynamic_rotate %44 by %c16_i32_13 dim 1 : vector<8x256xf32>, i32 -> vector<8x256xf32>
    %c240_i32_14 = arith.constant 240 : i32
    %47 = tpu.dynamic_rotate %44 by %c240_i32_14 dim 1 : vector<8x256xf32>, i32 -> vector<8x256xf32>
    %48 = arith.select %39, %47, %46 : vector<8x256xi1>, vector<8x256xf32>
    %49 = arith.select %41, %46, %47 : vector<8x256xi1>, vector<8x256xf32>
    %c0_15 = arith.constant 0 : index
    %c0_16 = arith.constant 0 : index
    %50 = vector.load %arg5[%c0_15, %c0_16] : memref<72x256xf32, #tpu.memory_space<vmem>>, vector<8x256xf32>
    tpu.vector_store %arg5[%c0_15, %c0_16], %48 {strides = array<i32>} : memref<72x256xf32, #tpu.memory_space<vmem>>, vector<8x256xf32>,
    %c24 = arith.constant 24 : index
    %c0_17 = arith.constant 0 : index
    %51 = vector.load %arg5[%c24, %c0_17] : memref<72x256xf32, #tpu.memory_space<vmem>>, vector<8x256xf32>
    tpu.vector_store %arg5[%c24, %c0_17], %44 {strides = array<i32>} : memref<72x256xf32, #tpu.memory_space<vmem>>, vector<8x256xf32>,
    %c48 = arith.constant 48 : index
    %c0_18 = arith.constant 0 : index
    %52 = vector.load %arg5[%c48, %c0_18] : memref<72x256xf32, #tpu.memory_space<vmem>>, vector<8x256xf32>
    tpu.vector_store %arg5[%c48, %c0_18], %49 {strides = array<i32>} : memref<72x256xf32, #tpu.memory_space<vmem>>, vector<8x256xf32>,
    %c16_i32_19 = arith.constant 16 : i32
    %53 = tpu.dynamic_rotate %0 by %c16_i32_19 dim 1 : vector<8x256xf32>, i32 -> vector<8x256xf32>
    %c240_i32_20 = arith.constant 240 : i32
    %54 = tpu.dynamic_rotate %0 by %c240_i32_20 dim 1 : vector<8x256xf32>, i32 -> vector<8x256xf32>
    %55 = arith.select %39, %54, %53 : vector<8x256xi1>, vector<8x256xf32>
    %56 = arith.select %41, %53, %54 : vector<8x256xi1>, vector<8x256xf32>
    %c8 = arith.constant 8 : index
    %c0_21 = arith.constant 0 : index
    %57 = vector.load %arg5[%c8, %c0_21] : memref<72x256xf32, #tpu.memory_space<vmem>>, vector<8x256xf32>
    tpu.vector_store %arg5[%c8, %c0_21], %55 {strides = array<i32>} : memref<72x256xf32, #tpu.memory_space<vmem>>, vector<8x256xf32>,
    %c32 = arith.constant 32 : index
    %c0_22 = arith.constant 0 : index
    %58 = vector.load %arg5[%c32, %c0_22] : memref<72x256xf32, #tpu.memory_space<vmem>>, vector<8x256xf32>
    tpu.vector_store %arg5[%c32, %c0_22], %0 {strides = array<i32>} : memref<72x256xf32, #tpu.memory_space<vmem>>, vector<8x256xf32>,
    %c56 = arith.constant 56 : index
    %c0_23 = arith.constant 0 : index
    %59 = vector.load %arg5[%c56, %c0_23] : memref<72x256xf32, #tpu.memory_space<vmem>>, vector<8x256xf32>
    tpu.vector_store %arg5[%c56, %c0_23], %56 {strides = array<i32>} : memref<72x256xf32, #tpu.memory_space<vmem>>, vector<8x256xf32>,
    %c16_i32_24 = arith.constant 16 : i32
    %60 = tpu.dynamic_rotate %45 by %c16_i32_24 dim 1 : vector<8x256xf32>, i32 -> vector<8x256xf32>
    %c240_i32_25 = arith.constant 240 : i32
    %61 = tpu.dynamic_rotate %45 by %c240_i32_25 dim 1 : vector<8x256xf32>, i32 -> vector<8x256xf32>
    %62 = arith.select %39, %61, %60 : vector<8x256xi1>, vector<8x256xf32>
    %63 = arith.select %41, %60, %61 : vector<8x256xi1>, vector<8x256xf32>
    %c16 = arith.constant 16 : index
    %c0_26 = arith.constant 0 : index
    %64 = vector.load %arg5[%c16, %c0_26] : memref<72x256xf32, #tpu.memory_space<vmem>>, vector<8x256xf32>
    tpu.vector_store %arg5[%c16, %c0_26], %62 {strides = array<i32>} : memref<72x256xf32, #tpu.memory_space<vmem>>, vector<8x256xf32>,
    %c40 = arith.constant 40 : index
    %c0_27 = arith.constant 0 : index
    %65 = vector.load %arg5[%c40, %c0_27] : memref<72x256xf32, #tpu.memory_space<vmem>>, vector<8x256xf32>
    tpu.vector_store %arg5[%c40, %c0_27], %45 {strides = array<i32>} : memref<72x256xf32, #tpu.memory_space<vmem>>, vector<8x256xf32>,
    %c64 = arith.constant 64 : index
    %c0_28 = arith.constant 0 : index
    %66 = vector.load %arg5[%c64, %c0_28] : memref<72x256xf32, #tpu.memory_space<vmem>>, vector<8x256xf32>
    tpu.vector_store %arg5[%c64, %c0_28], %63 {strides = array<i32>} : memref<72x256xf32, #tpu.memory_space<vmem>>, vector<8x256xf32>,
    %c0_29 = arith.constant 0 : index
    %c0_30 = arith.constant 0 : index
    %67 = vector.load %arg2[%c0_29, %c0_30] : memref<8x72xf32, #tpu.memory_space<vmem>>, vector<8x72xf32>
    %c0_31 = arith.constant 0 : index
    %c0_32 = arith.constant 0 : index
    %68 = vector.load %arg5[%c0_31, %c0_32] : memref<72x256xf32, #tpu.memory_space<vmem>>, vector<72x256xf32>
    %cst = arith.constant dense<0.000000e+00> : vector<8x256xf32>
    %69 = tpu.matmul %67, %68, %cst {dimension_numbers = #tpu.dot_dimension_numbers<[1], [0], [0], [1], [0, 0, 1, 1], [], []>} : vector<8x72xf32>, vector<72x256xf32>, vector<8x256xf32> -> vector<8x256xf32>
    %cst_33 = arith.constant dense<0.000000e+00> : vector<8xf32>
    %70 = vector.multi_reduction <add>, %69, %cst_33 [1] : vector<8x256xf32> to vector<8xf32>
    %71 = vector.shape_cast %70 : vector<8xf32> to vector<8x1xf32>
    %cst_34 = arith.constant 2.560000e+02 : f32
    %72 = vector.broadcast %cst_34 : f32 to vector<8x1xf32>
    %73 = arith.divf %71, %72 : vector<8x1xf32>
    %74 = arith.mulf %69, %69 : vector<8x256xf32>
    %cst_35 = arith.constant dense<0.000000e+00> : vector<8xf32>
    %75 = vector.multi_reduction <add>, %74, %cst_35 [1] : vector<8x256xf32> to vector<8xf32>
    %76 = vector.shape_cast %75 : vector<8xf32> to vector<8x1xf32>
    %cst_36 = arith.constant 2.560000e+02 : f32
    %77 = vector.broadcast %cst_36 : f32 to vector<8x1xf32>
    %78 = arith.divf %76, %77 : vector<8x1xf32>
    %79 = arith.mulf %73, %73 : vector<8x1xf32>
    %80 = arith.subf %78, %79 : vector<8x1xf32>
    %cst_37 = arith.constant 0.000000e+00 : f32
    %81 = vector.broadcast %cst_37 : f32 to vector<8x1xf32>
    %82 = arith.maximumf %80, %81 : vector<8x1xf32>
    %83 = vector.broadcast %73 : vector<8x1xf32> to vector<8x256xf32>
    %84 = arith.subf %69, %83 : vector<8x256xf32>
    %cst_38 = arith.constant 9.99999974E-6 : f32
    %85 = vector.broadcast %cst_38 : f32 to vector<8x1xf32>
    %86 = arith.addf %82, %85 : vector<8x1xf32>
    %87 = math.rsqrt %86 : vector<8x1xf32>
    %88 = vector.broadcast %87 : vector<8x1xf32> to vector<8x256xf32>
    %89 = arith.mulf %84, %88 : vector<8x256xf32>
    %cst_39 = arith.constant 0.000000e+00 : f32
    %90 = vector.broadcast %cst_39 : f32 to vector<8x256xf32>
    %91 = arith.maximumf %89, %90 : vector<8x256xf32>
    %c1_i32_40 = arith.constant 1 : i32
    %92 = tpu.dynamic_rotate %91 by %c1_i32_40 dim 1 : vector<8x256xf32>, i32 -> vector<8x256xf32>
    %c255_i32_41 = arith.constant 255 : i32
    %93 = tpu.dynamic_rotate %91 by %c255_i32_41 dim 1 : vector<8x256xf32>, i32 -> vector<8x256xf32>
    %94 = arith.select %19, %93, %92 : vector<8x256xi1>, vector<8x256xf32>
    %95 = arith.select %37, %92, %93 : vector<8x256xi1>, vector<8x256xf32>
    %c16_i32_42 = arith.constant 16 : i32
    %96 = tpu.dynamic_rotate %94 by %c16_i32_42 dim 1 : vector<8x256xf32>, i32 -> vector<8x256xf32>
    %c240_i32_43 = arith.constant 240 : i32
    %97 = tpu.dynamic_rotate %94 by %c240_i32_43 dim 1 : vector<8x256xf32>, i32 -> vector<8x256xf32>
    %98 = arith.select %39, %97, %96 : vector<8x256xi1>, vector<8x256xf32>
    %99 = arith.select %41, %96, %97 : vector<8x256xi1>, vector<8x256xf32>
    %c0_44 = arith.constant 0 : index
    %c0_45 = arith.constant 0 : index
    %100 = vector.load %arg5[%c0_44, %c0_45] : memref<72x256xf32, #tpu.memory_space<vmem>>, vector<8x256xf32>
    tpu.vector_store %arg5[%c0_44, %c0_45], %98 {strides = array<i32>} : memref<72x256xf32, #tpu.memory_space<vmem>>, vector<8x256xf32>,
    %c24_46 = arith.constant 24 : index
    %c0_47 = arith.constant 0 : index
    %101 = vector.load %arg5[%c24_46, %c0_47] : memref<72x256xf32, #tpu.memory_space<vmem>>, vector<8x256xf32>
    tpu.vector_store %arg5[%c24_46, %c0_47], %94 {strides = array<i32>} : memref<72x256xf32, #tpu.memory_space<vmem>>, vector<8x256xf32>,
    %c48_48 = arith.constant 48 : index
    %c0_49 = arith.constant 0 : index
    %102 = vector.load %arg5[%c48_48, %c0_49] : memref<72x256xf32, #tpu.memory_space<vmem>>, vector<8x256xf32>
    tpu.vector_store %arg5[%c48_48, %c0_49], %99 {strides = array<i32>} : memref<72x256xf32, #tpu.memory_space<vmem>>, vector<8x256xf32>,
    %c16_i32_50 = arith.constant 16 : i32
    %103 = tpu.dynamic_rotate %91 by %c16_i32_50 dim 1 : vector<8x256xf32>, i32 -> vector<8x256xf32>
    %c240_i32_51 = arith.constant 240 : i32
    %104 = tpu.dynamic_rotate %91 by %c240_i32_51 dim 1 : vector<8x256xf32>, i32 -> vector<8x256xf32>
    %105 = arith.select %39, %104, %103 : vector<8x256xi1>, vector<8x256xf32>
    %106 = arith.select %41, %103, %104 : vector<8x256xi1>, vector<8x256xf32>
    %c8_52 = arith.constant 8 : index
    %c0_53 = arith.constant 0 : index
    %107 = vector.load %arg5[%c8_52, %c0_53] : memref<72x256xf32, #tpu.memory_space<vmem>>, vector<8x256xf32>
    tpu.vector_store %arg5[%c8_52, %c0_53], %105 {strides = array<i32>} : memref<72x256xf32, #tpu.memory_space<vmem>>, vector<8x256xf32>,
    %c32_54 = arith.constant 32 : index
    %c0_55 = arith.constant 0 : index
    %108 = vector.load %arg5[%c32_54, %c0_55] : memref<72x256xf32, #tpu.memory_space<vmem>>, vector<8x256xf32>
    tpu.vector_store %arg5[%c32_54, %c0_55], %91 {strides = array<i32>} : memref<72x256xf32, #tpu.memory_space<vmem>>, vector<8x256xf32>,
    %c56_56 = arith.constant 56 : index
    %c0_57 = arith.constant 0 : index
    %109 = vector.load %arg5[%c56_56, %c0_57] : memref<72x256xf32, #tpu.memory_space<vmem>>, vector<8x256xf32>
    tpu.vector_store %arg5[%c56_56, %c0_57], %106 {strides = array<i32>} : memref<72x256xf32, #tpu.memory_space<vmem>>, vector<8x256xf32>,
    %c16_i32_58 = arith.constant 16 : i32
    %110 = tpu.dynamic_rotate %95 by %c16_i32_58 dim 1 : vector<8x256xf32>, i32 -> vector<8x256xf32>
    %c240_i32_59 = arith.constant 240 : i32
    %111 = tpu.dynamic_rotate %95 by %c240_i32_59 dim 1 : vector<8x256xf32>, i32 -> vector<8x256xf32>
    %112 = arith.select %39, %111, %110 : vector<8x256xi1>, vector<8x256xf32>
    %113 = arith.select %41, %110, %111 : vector<8x256xi1>, vector<8x256xf32>
    %c16_60 = arith.constant 16 : index
    %c0_61 = arith.constant 0 : index
    %114 = vector.load %arg5[%c16_60, %c0_61] : memref<72x256xf32, #tpu.memory_space<vmem>>, vector<8x256xf32>
    tpu.vector_store %arg5[%c16_60, %c0_61], %112 {strides = array<i32>} : memref<72x256xf32, #tpu.memory_space<vmem>>, vector<8x256xf32>,
    %c40_62 = arith.constant 40 : index
    %c0_63 = arith.constant 0 : index
    %115 = vector.load %arg5[%c40_62, %c0_63] : memref<72x256xf32, #tpu.memory_space<vmem>>, vector<8x256xf32>
    tpu.vector_store %arg5[%c40_62, %c0_63], %95 {strides = array<i32>} : memref<72x256xf32, #tpu.memory_space<vmem>>, vector<8x256xf32>,
    %c64_64 = arith.constant 64 : index
    %c0_65 = arith.constant 0 : index
    %116 = vector.load %arg5[%c64_64, %c0_65] : memref<72x256xf32, #tpu.memory_space<vmem>>, vector<8x256xf32>
    tpu.vector_store %arg5[%c64_64, %c0_65], %113 {strides = array<i32>} : memref<72x256xf32, #tpu.memory_space<vmem>>, vector<8x256xf32>,
    %c0_66 = arith.constant 0 : index
    %c0_67 = arith.constant 0 : index
    %117 = vector.load %arg3[%c0_66, %c0_67] : memref<8x72xf32, #tpu.memory_space<vmem>>, vector<8x72xf32>
    %c0_68 = arith.constant 0 : index
    %c0_69 = arith.constant 0 : index
    %118 = vector.load %arg5[%c0_68, %c0_69] : memref<72x256xf32, #tpu.memory_space<vmem>>, vector<72x256xf32>
    %cst_70 = arith.constant dense<0.000000e+00> : vector<8x256xf32>
    %119 = tpu.matmul %117, %118, %cst_70 {dimension_numbers = #tpu.dot_dimension_numbers<[1], [0], [0], [1], [0, 0, 1, 1], [], []>} : vector<8x72xf32>, vector<72x256xf32>, vector<8x256xf32> -> vector<8x256xf32>
    %cst_71 = arith.constant dense<0.000000e+00> : vector<8xf32>
    %120 = vector.multi_reduction <add>, %119, %cst_71 [1] : vector<8x256xf32> to vector<8xf32>
    %121 = vector.shape_cast %120 : vector<8xf32> to vector<8x1xf32>
    %cst_72 = arith.constant 2.560000e+02 : f32
    %122 = vector.broadcast %cst_72 : f32 to vector<8x1xf32>
    %123 = arith.divf %121, %122 : vector<8x1xf32>
    %124 = arith.mulf %119, %119 : vector<8x256xf32>
    %cst_73 = arith.constant dense<0.000000e+00> : vector<8xf32>
    %125 = vector.multi_reduction <add>, %124, %cst_73 [1] : vector<8x256xf32> to vector<8xf32>
    %126 = vector.shape_cast %125 : vector<8xf32> to vector<8x1xf32>
    %cst_74 = arith.constant 2.560000e+02 : f32
    %127 = vector.broadcast %cst_74 : f32 to vector<8x1xf32>
    %128 = arith.divf %126, %127 : vector<8x1xf32>
    %129 = arith.mulf %123, %123 : vector<8x1xf32>
    %130 = arith.subf %128, %129 : vector<8x1xf32>
    %cst_75 = arith.constant 0.000000e+00 : f32
    %131 = vector.broadcast %cst_75 : f32 to vector<8x1xf32>
    %132 = arith.maximumf %130, %131 : vector<8x1xf32>
    %133 = vector.broadcast %123 : vector<8x1xf32> to vector<8x256xf32>
    %134 = arith.subf %119, %133 : vector<8x256xf32>
    %cst_76 = arith.constant 9.99999974E-6 : f32
    %135 = vector.broadcast %cst_76 : f32 to vector<8x1xf32>
    %136 = arith.addf %132, %135 : vector<8x1xf32>
    %137 = math.rsqrt %136 : vector<8x1xf32>
    %138 = vector.broadcast %137 : vector<8x1xf32> to vector<8x256xf32>
    %139 = arith.mulf %134, %138 : vector<8x256xf32>
    %140 = arith.addf %0, %139 : vector<8x256xf32>
    %c0_77 = arith.constant 0 : index
    %c0_78 = arith.constant 0 : index
    %141 = vector.load %arg4[%c0_77, %c0_78] : memref<8x256xf32, #tpu.memory_space<vmem>>, vector<8x256xf32>
    tpu.vector_store %arg4[%c0_77, %c0_78], %140 {strides = array<i32>} : memref<8x256xf32, #tpu.memory_space<vmem>>, vector<8x256xf32>,
    return
  }
  func.func @transform_0(%arg0: i32) -> (i32, i32) {
    %c0_i32 = arith.constant 0 : i32
    %c0_i32_0 = arith.constant 0 : i32
    return %arg0, %c0_i32 : i32, i32
  }
  func.func @transform_1(%arg0: i32) -> (i32, i32) {
    %c0_i32 = arith.constant 0 : i32
    %c0_i32_0 = arith.constant 0 : i32
    %c0_i32_1 = arith.constant 0 : i32
    return %c0_i32, %c0_i32_0 : i32, i32
  }
  func.func @transform_2(%arg0: i32) -> (i32, i32) {
    %c0_i32 = arith.constant 0 : i32
    %c0_i32_0 = arith.constant 0 : i32
    %c0_i32_1 = arith.constant 0 : i32
    return %c0_i32, %c0_i32_0 : i32, i32
  }
  func.func @transform_3(%arg0: i32) -> (i32, i32) {
    %c0_i32 = arith.constant 0 : i32
    %c0_i32_0 = arith.constant 0 : i32
    return %arg0, %c0_i32 : i32, i32
  }
}

</mosaic_0001>

<llo_original>
// kernel: tpu_custom_call.1
$region0: #{tpu_custom_call.1}
  #allocation0 [shape = 'u32[]', space=smem, size = 0x4, offset = 0x4, fixed_abs, tag = 'smem constant byte address 0x4 - core index']
  #allocation1 [shape = 'u32[144,128]{1,0:T(1,128)}', space=vmem, size = 0x12000, scoped, tag = 'internal scratch']
  #allocation2 [shape = 'f32[72,256]{1,0:T(8,128)}', space=vmem, size = 0x12000, scoped, tag = 'scratch operand']
  %s0 = inlined_call_operand.hbm [shape: f32[8,256], index: 0, kind: input, shape index: {}]
  %s1 = inlined_call_operand.hbm [shape: f32[8,72], index: 1, kind: input, shape index: {}]
  %s2 = inlined_call_operand.hbm [shape: f32[8,72], index: 2, kind: input, shape index: {}]
  %s3 = inlined_call_operand.hbm [shape: f32[8,256], index: 3, kind: output, shape index: {}]
  %s4 = sld [smem:[#allocation0]]
  $region34: #{tpu_custom_call.1} parent=0
    _
  %s6 = ssub.s32 1, %s4
  %s7 = scalar_select 0, %s6, %s4
  $region1: #{tpu_custom_call.1} parent=0
    #allocation3 [shape = 'u8[8192]{0}', space=vmem, size = 0x2000, scoped, tag = 'input window, operand 0, single buffered']
    #allocation4 [shape = 's32[1]{0}', space=sflag, size = 0x4, scoped, tag = 'scoped memory for tpu_custom_call.1']
    #allocation5 [shape = 's32[1]{0}', space=sflag, size = 0x4, scoped, tag = 'scoped memory for tpu_custom_call.1']
    #allocation6 [shape = 'u8[4096]{0}', space=vmem, size = 0x1000, scoped, tag = 'input window, operand 1, single buffered']
    #allocation7 [shape = 's32[1]{0}', space=sflag, size = 0x4, scoped, tag = 'scoped memory for tpu_custom_call.1']
    #allocation8 [shape = 'u8[4096]{0}', space=vmem, size = 0x1000, scoped, tag = 'input window, operand 2, single buffered']
    #allocation9 [shape = 'u8[8192]{0}', space=vmem, size = 0x2000, scoped, tag = 'output window, operand 0, single buffered']
    %8 = vsyncpa [#allocation4], 0
    %9 = vsyncpa [#allocation7], 0
    %10 = vsyncpa [#allocation5], 0
    // Predicated region
    $region2: #{tpu_custom_call.1} parent=1 // pred_check
      _
    $region3: #{tpu_custom_call.1} parent=1 // pred_check_branch
      %12 = sbr.rel (0) target = $region5
    $region4: #{tpu_custom_call.1} parent=1 // pred_region
      %s14 = ssub.s32 256, 256
      %15 = vsyncadd [#allocation4], %s14
      %s17 = sshll.u32 [#allocation3], 4
      %s18 = int_to_ptr.vmem [resolvable:$true] %s17
      %20 = dma.hbm_to_vmem [thread:$0]  %s0, 256, %s18, [#allocation4]
    $region5: #{tpu_custom_call.1} parent=1 // pred_fallthru
      _
    // Predicated region
    $region6: #{tpu_custom_call.1} parent=1 // pred_check
      _
    $region7: #{tpu_custom_call.1} parent=1 // pred_check_branch
      %22 = sbr.rel (0) target = $region9
    $region8: #{tpu_custom_call.1} parent=1 // pred_region
      %s24 = ssub.s32 128, 128
      %25 = vsyncadd [#allocation7], %s24
      %s27 = sshll.u32 [#allocation6], 4
      %s28 = int_to_ptr.vmem [resolvable:$true] %s27
      %30 = dma.hbm_to_vmem [thread:$0]  %s1, 128, %s28, [#allocation7]
    $region9: #{tpu_custom_call.1} parent=1 // pred_fallthru
      _
    // Predicated region
    $region10: #{tpu_custom_call.1} parent=1 // pred_check
      _
    $region11: #{tpu_custom_call.1} parent=1 // pred_check_branch
      %32 = sbr.rel (0) target = $region13
    $region12: #{tpu_custom_call.1} parent=1 // pred_region
      %s34 = ssub.s32 128, 128
      %35 = vsyncadd [#allocation7], %s34
      %s37 = sshll.u32 [#allocation8], 4
      %s38 = int_to_ptr.vmem [resolvable:$true] %s37
      %40 = dma.hbm_to_vmem [thread:$0]  %s2, 128, %s38, [#allocation7]
    $region13: #{tpu_custom_call.1} parent=1 // pred_fallthru
      _
    // Predicated region
    $region14: #{tpu_custom_call.1} parent=1 // pred_check
      _
    $region15: #{tpu_custom_call.1} parent=1 // pred_check_branch
      %42 = sbr.rel (0) target = $region17
    $region16: #{tpu_custom_call.1} parent=1 // pred_region
      %43 = dma.done [#allocation4], 256
    $region17: #{tpu_custom_call.1} parent=1 // pred_fallthru
      _
    // Predicated region
    $region18: #{tpu_custom_call.1} parent=1 // pred_check
      _
    $region19: #{tpu_custom_call.1} parent=1 // pred_check_branch
      %45 = sbr.rel (0) target = $region21
    $region20: #{tpu_custom_call.1} parent=1 // pred_region
      %46 = dma.done [#allocation7], 128
    $region21: #{tpu_custom_call.1} parent=1 // pred_fallthru
      _
    // Predicated region
    $region22: #{tpu_custom_call.1} parent=1 // pred_check
      _
    $region23: #{tpu_custom_call.1} parent=1 // pred_check_branch
      %48 = sbr.rel (0) target = $region25
    $region24: #{tpu_custom_call.1} parent=1 // pred_region
      %49 = dma.done [#allocation7], 128
    $region25: #{tpu_custom_call.1} parent=1 // pred_fallthru
      _
    %v50 = vld [vmem:[#allocation3] sm:$0xff]
    %v51 = vld [vmem:[#allocation3 + $0x8] sm:$0xff]
    %v52 = vlaneseq
    %v53 = vand.u32 %v52, 127
    %v54 = vadd.s32 %v53, 128
    %vm55 = vcmp.lt.s32.totalorder %v53, 0
    %v56 = vsub.s32 0, %v53
    %v57 = vsel %vm55, %v56, %v53
    %v58 = vshrl.u32 %v57, 4
    %v59 = vand.u32 %v57, 15
    %v60 = vsub.s32 0, %v59
    %v61 = vsel %vm55, %v60, %v59
    %vm62 = vcmp.lt.s32.totalorder %v54, 0
    %v63 = vsub.s32 0, %v54
    %v64 = vsel %vm62, %v63, %v54
    %v65 = vshrl.u32 %v64, 4
    %v66 = vand.u32 %v64, 15
    %v67 = vsub.s32 0, %v66
    %v68 = vsel %vm62, %v67, %v66
    %vm69 = vcmp.ne.s32.totalorder %v61, 0
    %vm70 = vcmp.ne.s32.totalorder %v68, 0
    %vm71 = vcmp.lt.s32.totalorder %v61, 0
    %vm72 = vcmp.lt.s32.totalorder %v68, 0
    %vm73 = vmand %vm71, %vm69
    %vm74 = vmand %vm72, %vm70
    %v75 = vadd.s32 %v61, 16
    %v76 = vadd.s32 %v68, 16
    %v77 = vsel %vm73, %v75, %v61
    %v78 = vsel %vm74, %v76, %v68
    %vm79 = vcmp.eq.s32.totalorder %v77, 0
    %vm80 = vcmp.eq.s32.totalorder %v78, 0
    %vm81 = vcmp.eq.s32.totalorder %v77, 15
    %vm82 = vcmp.eq.s32.totalorder %v78, 15
    %vm83 = vcmp.lt.s32.totalorder %v53, 16
    %vm84 = vcmp.lt.s32.totalorder %v54, 16
    %vm85 = vcmp.ge.s32.totalorder %v53, 240
    %vm86 = vcmp.ge.s32.totalorder %v54, 240
    %87 = vrot.lane.b32.xlu0 %v50, 1
    %v88 = vpop.permute.xlu0 %87
    %89 = vrot.lane.b32.xlu0 %v51, 1
    %v90 = vpop.permute.xlu0 %89
    %vm91 = vcmp.lt.s32.totalorder %v53, 1
    %v92 = vsel %vm91, %v88, %v90
    %v93 = vsel %vm91, %v90, %v88
    %94 = vrot.lane.b32.xlu0 %v50, 127
    %v95 = vpop.permute.xlu0 %94
    %96 = vrot.lane.b32.xlu0 %v51, 127
    %v97 = vpop.permute.xlu0 %96
    %vm98 = vcmp.lt.s32.totalorder %v53, 127
    %v99 = vsel %vm98, %v95, %v97
    %v100 = vsel %vm98, %v97, %v95
    %v101 = vsel %vm79, %v99, %v93
    %v102 = vsel %vm80, %v100, %v92
    %v103 = vsel %vm81, %v93, %v99
    %v104 = vsel %vm82, %v92, %v100
    %105 = vrot.lane.b32.xlu0 %v101, 16
    %v106 = vpop.permute.xlu0 %105
    %107 = vrot.lane.b32.xlu0 %v102, 16
    %v108 = vpop.permute.xlu0 %107
    %v109 = vsel %vm83, %v106, %v108
    %v110 = vsel %vm83, %v108, %v106
    %111 = vrot.lane.b32.xlu0 %v101, 112
    %v112 = vpop.permute.xlu0 %111
    %113 = vrot.lane.b32.xlu0 %v102, 112
    %v114 = vpop.permute.xlu0 %113
    %vm115 = vcmp.lt.s32.totalorder %v53, 112
    %v116 = vsel %vm115, %v112, %v114
    %v117 = vsel %vm115, %v114, %v112
    %v118 = vsel %vm83, %v116, %v110
    %v119 = vsel %vm84, %v117, %v109
    %v120 = vsel %vm85, %v110, %v116
    %v121 = vsel %vm86, %v109, %v117
    %122 = vst [vmem:[#allocation2] sm:$0xff] %v118
    %123 = vst [vmem:[#allocation2 + $0x8] sm:$0xff] %v119
    %124 = vst [vmem:[#allocation2 + $0x30] sm:$0xff] %v101
    %125 = vst [vmem:[#allocation2 + $0x38] sm:$0xff] %v102
    %126 = vst [vmem:[#allocation2 + $0x60] sm:$0xff] %v120
    %127 = vst [vmem:[#allocation2 + $0x68] sm:$0xff] %v121
    %128 = vrot.lane.b32.xlu0 %v50, 16
    %v129 = vpop.permute.xlu0 %128
    %130 = vrot.lane.b32.xlu0 %v51, 16
    %v131 = vpop.permute.xlu0 %130
    %v132 = vsel %vm83, %v129, %v131
    %v133 = vsel %vm83, %v131, %v129
    %134 = vrot.lane.b32.xlu0 %v50, 112
    %v135 = vpop.permute.xlu0 %134
    %136 = vrot.lane.b32.xlu0 %v51, 112
    %v137 = vpop.permute.xlu0 %136
    %v138 = vsel %vm115, %v135, %v137
    %v139 = vsel %vm115, %v137, %v135
    %v140 = vsel %vm83, %v138, %v133
    %v141 = vsel %vm84, %v139, %v132
    %v142 = vsel %vm85, %v133, %v138
    %v143 = vsel %vm86, %v132, %v139
    %144 = vst [vmem:[#allocation2 + $0x10] sm:$0xff] %v140
    %145 = vst [vmem:[#allocation2 + $0x18] sm:$0xff] %v141
    %146 = vst [vmem:[#allocation2 + $0x40] sm:$0xff] %v50
    %147 = vst [vmem:[#allocation2 + $0x48] sm:$0xff] %v51
    %148 = vst [vmem:[#allocation2 + $0x70] sm:$0xff] %v142
    %149 = vst [vmem:[#allocation2 + $0x78] sm:$0xff] %v143
    %150 = vrot.lane.b32.xlu0 %v103, 16
    %v151 = vpop.permute.xlu0 %150
    %152 = vrot.lane.b32.xlu0 %v104, 16
    %v153 = vpop.permute.xlu0 %152
    %v154 = vsel %vm83, %v151, %v153
    %v155 = vsel %vm83, %v153, %v151
    %156 = vrot.lane.b32.xlu0 %v103, 112
    %v157 = vpop.permute.xlu0 %156
    %158 = vrot.lane.b32.xlu0 %v104, 112
    %v159 = vpop.permute.xlu0 %158
    %v160 = vsel %vm115, %v157, %v159
    %v161 = vsel %vm115, %v159, %v157
    %v162 = vsel %vm83, %v160, %v155
    %v163 = vsel %vm84, %v161, %v154
    %v164 = vsel %vm85, %v155, %v160
    %v165 = vsel %vm86, %v154, %v161
    %166 = vst [vmem:[#allocation2 + $0x20] sm:$0xff] %v162
    %167 = vst [vmem:[#allocation2 + $0x28] sm:$0xff] %v163
    %168 = vst [vmem:[#allocation2 + $0x50] sm:$0xff] %v103
    %169 = vst [vmem:[#allocation2 + $0x58] sm:$0xff] %v104
    %170 = vst [vmem:[#allocation2 + $0x80] sm:$0xff] %v164
    %171 = vst [vmem:[#allocation2 + $0x88] sm:$0xff] %v165
    %v172 = vld [vmem:[#allocation6] sm:$0xff]
    %v173 = vld [vmem:[#allocation2] sm:$0xff]
    %v174 = vld [vmem:[#allocation2 + $0x8] sm:$0xff]
    %v175 = vld [vmem:[#allocation2 + $0x10] sm:$0xff]
    %v176 = vld [vmem:[#allocation2 + $0x18] sm:$0xff]
    %v177 = vld [vmem:[#allocation2 + $0x20] sm:$0xff]
    %v178 = vld [vmem:[#allocation2 + $0x28] sm:$0xff]
    %v179 = vld [vmem:[#allocation2 + $0x30] sm:$0xff]
    %v180 = vld [vmem:[#allocation2 + $0x38] sm:$0xff]
    %v181 = vld [vmem:[#allocation2 + $0x40] sm:$0xff]
    %v182 = vld [vmem:[#allocation2 + $0x48] sm:$0xff]
    %v183 = vld [vmem:[#allocation2 + $0x50] sm:$0xff]
    %v184 = vld [vmem:[#allocation2 + $0x58] sm:$0xff]
    %v185 = vld [vmem:[#allocation2 + $0x60] sm:$0xff]
    %v186 = vld [vmem:[#allocation2 + $0x68] sm:$0xff]
    %v187 = vld [vmem:[#allocation2 + $0x70] sm:$0xff]
    %v188 = vld [vmem:[#allocation2 + $0x78] sm:$0xff]
    %v189 = vld [vmem:[#allocation2 + $0x80] sm:$0xff]
    %v190 = vld [vmem:[#allocation2 + $0x88] sm:$0xff]
    %vm191 = vcmask 588800
    %v193 = vsel %vm191, %v172, 0
    %195 = vmatprep.subr.mxu0 %v174
    %196 = vmatpush1.msra.mxu0 %v173
    %197 = vmatprep.subr.mxu0 %v176
    %198 = vmatpush1.msra.mxu0 %v175
    %199 = vmatprep.subr.mxu0 %v178
    %200 = vmatpush1.msra.mxu0 %v177
    %201 = vmatprep.subr.mxu0 %v180
    %202 = vmatpush1.msra.mxu0 %v179
    %203 = vmatprep.subr.mxu0 %v182
    %204 = vmatpush1.msra.mxu0 %v181
    %205 = vmatprep.subr.mxu0 %v184
    %206 = vmatpush1.msra.mxu0 %v183
    %207 = vmatprep.subr.mxu0 %v186
    %208 = vmatpush1.msra.mxu0 %v185
    %209 = vmatprep.subr.mxu0 %v188
    %210 = vmatpush1.msra.mxu0 %v187
    %211 = vmatprep.subr.mxu0 %v190
    %212 = vmatpush1.msra.mxu0 %v189
    %213 = vmatprep.subr.mxu0 0.0
    %214 = vmatpush1.msra.mxu0 0.0
    %215 = vmatprep.subr.mxu0 0.0
    %216 = vmatpush1.msra.mxu0 0.0
    %217 = vmatprep.subr.mxu0 0.0
    %218 = vmatpush1.msra.mxu0 0.0
    %219 = vmatprep.subr.mxu0 0.0
    %220 = vmatpush1.msra.mxu0 0.0
    %221 = vmatprep.subr.mxu0 0.0
    %222 = vmatpush1.msra.mxu0 0.0
    %223 = vmatprep.subr.mxu0 0.0
    %224 = vmatpush1.msra.mxu0 0.0
    %225 = vmatprep.subr.mxu0 0.0
    %226 = vmatpush1.msra.mxu0 0.0
    %227 = vmatprep.subr.mxu0 0.0
    %228 = vmatpush1.msra.mxu0 0.0
    %229 = vmatprep.subr.mxu0 0.0
    %230 = vmatpush1.msra.mxu0 0.0
    %231 = vmatprep.subr.mxu0 0.0
    %232 = vmatpush1.msra.mxu0 0.0
    %233 = vmatprep.subr.mxu0 0.0
    %234 = vmatpush1.msra.mxu0 0.0
    %235 = vmatprep.subr.mxu0 0.0
    %236 = vmatpush1.msra.mxu0 0.0
    %237 = vmatprep.subr.mxu0 0.0
    %238 = vmatpush1.msra.mxu0 0.0
    %239 = vmatprep.subr.mxu0 0.0
    %240 = vmatpush1.msra.mxu0 0.0
    %241 = vmatprep.subr.mxu0 0.0
    %242 = vmatpush1.msra.mxu0 0.0
    %243 = vmatprep.subr.mxu0 0.0
    %244 = vmatpush1.msra.mxu0 0.0
    %245 = vmatprep.subr.mxu0 0.0
    %246 = vmatpush1.msra.mxu0 0.0
    %247 = vmatprep.subr.mxu0 0.0
    %248 = vmatpush1.msra.mxu0 0.0
    %249 = vmatprep.subr.mxu0 0.0
    %250 = vmatpush1.msra.mxu0 0.0
    %251 = vmatprep.subr.mxu0 0.0
    %252 = vmatpush1.msra.mxu0 0.0
    %253 = vmatprep.subr.mxu0 0.0
    %254 = vmatpush1.msra.mxu0 0.0
    %255 = vmatprep.subr.mxu0 0.0
    %256 = vmatpush1.msra.mxu0 0.0
    %257 = vmatprep.subr.mxu0 0.0
    %258 = vmatpush1.msra.mxu0 0.0
    %259 = vmatprep.mubr.f32.mxu0 0.0
    %260 = vmatmul.mubr.f32.gmra.mrb[0].mxu0 %v193
    %v261 = vpop.f32.mrb[0].mxu0
    %v262 = vadd.f32 0.0, %v261
    %v263 = vpop.f32.mrb[0].mxu0
    %v264 = vadd.f32 0.0, %v263
    %265 = vdwg.mxu0
    %v266 = vadd.f32 %v262, %v264
    %267 = vadd.xlane.f32.xlu0 %v266
    %v268 = vpop.xlane.xlu0 %267
    %v269 = vrcp.pop 256.0
    %v270 = vmul.f32 %v268, %v269
    %v271 = vmul.f32 %v262, %v262
    %v272 = vmul.f32 %v264, %v264
    %v273 = vadd.f32 %v271, %v272
    %274 = vadd.xlane.f32.xlu0 %v273
    %v275 = vpop.xlane.xlu0 %274
    %v276 = vmul.f32 %v275, %v269
    %v277 = vmul.f32 %v270, %v270
    %v278 = vsub.f32 %v276, %v277
    %v279 = vmax.f32 %v278, 0.0
    %v280 = vsub.f32 %v262, %v270
    %v281 = vsub.f32 %v264, %v270
    %v282 = vadd.f32 %v279, 1e-05
    %v283 = vrsqrt.pop %v282
    %v284 = vmul.f32 %v280, %v283
    %v285 = vmul.f32 %v281, %v283
    %v286 = vmax.f32 %v284, 0.0
    %v287 = vmax.f32 %v285, 0.0
    %288 = vrot.lane.b32.xlu0 %v286, 1
    %v289 = vpop.permute.xlu0 %288
    %290 = vrot.lane.b32.xlu0 %v287, 1
    %v291 = vpop.permute.xlu0 %290
    %v292 = vsel %vm91, %v289, %v291
    %v293 = vsel %vm91, %v291, %v289
    %294 = vrot.lane.b32.xlu0 %v286, 127
    %v295 = vpop.permute.xlu0 %294
    %296 = vrot.lane.b32.xlu0 %v287, 127
    %v297 = vpop.permute.xlu0 %296
    %v298 = vsel %vm98, %v295, %v297
    %v299 = vsel %vm98, %v297, %v295
    %v300 = vsel %vm79, %v298, %v293
    %v301 = vsel %vm80, %v299, %v292
    %v302 = vsel %vm81, %v293, %v298
    %v303 = vsel %vm82, %v292, %v299
    %304 = vrot.lane.b32.xlu0 %v300, 16
    %v305 = vpop.permute.xlu0 %304
    %306 = vrot.lane.b32.xlu0 %v301, 16
    %v307 = vpop.permute.xlu0 %306
    %v308 = vsel %vm83, %v305, %v307
    %v309 = vsel %vm83, %v307, %v305
    %310 = vrot.lane.b32.xlu0 %v300, 112
    %v311 = vpop.permute.xlu0 %310
    %312 = vrot.lane.b32.xlu0 %v301, 112
    %v313 = vpop.permute.xlu0 %312
    %v314 = vsel %vm115, %v311, %v313
    %v315 = vsel %vm115, %v313, %v311
    %v316 = vsel %vm83, %v314, %v309
    %v317 = vsel %vm84, %v315, %v308
    %v318 = vsel %vm85, %v309, %v314
    %v319 = vsel %vm86, %v308, %v315
    %320 = vst [vmem:[#allocation2] sm:$0xff] %v316
    %321 = vst [vmem:[#allocation2 + $0x8] sm:$0xff] %v317
    %322 = vst [vmem:[#allocation2 + $0x30] sm:$0xff] %v300
    %323 = vst [vmem:[#allocation2 + $0x38] sm:$0xff] %v301
    %324 = vst [vmem:[#allocation2 + $0x60] sm:$0xff] %v318
    %325 = vst [vmem:[#allocation2 + $0x68] sm:$0xff] %v319
    %326 = vrot.lane.b32.xlu0 %v286, 16
    %v327 = vpop.permute.xlu0 %326
    %328 = vrot.lane.b32.xlu0 %v287, 16
    %v329 = vpop.permute.xlu0 %328
    %v330 = vsel %vm83, %v327, %v329
    %v331 = vsel %vm83, %v329, %v327
    %332 = vrot.lane.b32.xlu0 %v286, 112
    %v333 = vpop.permute.xlu0 %332
    %334 = vrot.lane.b32.xlu0 %v287, 112
    %v335 = vpop.permute.xlu0 %334
    %v336 = vsel %vm115, %v333, %v335
    %v337 = vsel %vm115, %v335, %v333
    %v338 = vsel %vm83, %v336, %v331
    %v339 = vsel %vm84, %v337, %v330
    %v340 = vsel %vm85, %v331, %v336
    %v341 = vsel %vm86, %v330, %v337
    %342 = vst [vmem:[#allocation2 + $0x10] sm:$0xff] %v338
    %343 = vst [vmem:[#allocation2 + $0x18] sm:$0xff] %v339
    %344 = vst [vmem:[#allocation2 + $0x40] sm:$0xff] %v286
    %345 = vst [vmem:[#allocation2 + $0x48] sm:$0xff] %v287
    %346 = vst [vmem:[#allocation2 + $0x70] sm:$0xff] %v340
    %347 = vst [vmem:[#allocation2 + $0x78] sm:$0xff] %v341
    %348 = vrot.lane.b32.xlu0 %v302, 16
    %v349 = vpop.permute.xlu0 %348
    %350 = vrot.lane.b32.xlu0 %v303, 16
    %v351 = vpop.permute.xlu0 %350
    %v352 = vsel %vm83, %v349, %v351
    %v353 = vsel %vm83, %v351, %v349
    %354 = vrot.lane.b32.xlu0 %v302, 112
    %v355 = vpop.permute.xlu0 %354
    %356 = vrot.lane.b32.xlu0 %v303, 112
    %v357 = vpop.permute.xlu0 %356
    %v358 = vsel %vm115, %v355, %v357
    %v359 = vsel %vm115, %v357, %v355
    %v360 = vsel %vm83, %v358, %v353
    %v361 = vsel %vm84, %v359, %v352
    %v362 = vsel %vm85, %v353, %v358
    %v363 = vsel %vm86, %v352, %v359
    %364 = vst [vmem:[#allocation2 + $0x20] sm:$0xff] %v360
    %365 = vst [vmem:[#allocation2 + $0x28] sm:$0xff] %v361
    %366 = vst [vmem:[#allocation2 + $0x50] sm:$0xff] %v302
    %367 = vst [vmem:[#allocation2 + $0x58] sm:$0xff] %v303
    %368 = vst [vmem:[#allocation2 + $0x80] sm:$0xff] %v362
    %369 = vst [vmem:[#allocation2 + $0x88] sm:$0xff] %v363
    %v370 = vld [vmem:[#allocation8] sm:$0xff]
    %v371 = vld [vmem:[#allocation2] sm:$0xff]
    %v372 = vld [vmem:[#allocation2 + $0x8] sm:$0xff]
    %v373 = vld [vmem:[#allocation2 + $0x10] sm:$0xff]
    %v374 = vld [vmem:[#allocation2 + $0x18] sm:$0xff]
    %v375 = vld [vmem:[#allocation2 + $0x20] sm:$0xff]
    %v376 = vld [vmem:[#allocation2 + $0x28] sm:$0xff]
    %v377 = vld [vmem:[#allocation2 + $0x30] sm:$0xff]
    %v378 = vld [vmem:[#allocation2 + $0x38] sm:$0xff]
    %v379 = vld [vmem:[#allocation2 + $0x40] sm:$0xff]
    %v380 = vld [vmem:[#allocation2 + $0x48] sm:$0xff]
    %v381 = vld [vmem:[#allocation2 + $0x50] sm:$0xff]
    %v382 = vld [vmem:[#allocation2 + $0x58] sm:$0xff]
    %v383 = vld [vmem:[#allocation2 + $0x60] sm:$0xff]
    %v384 = vld [vmem:[#allocation2 + $0x68] sm:$0xff]
    %v385 = vld [vmem:[#allocation2 + $0x70] sm:$0xff]
    %v386 = vld [vmem:[#allocation2 + $0x78] sm:$0xff]
    %v387 = vld [vmem:[#allocation2 + $0x80] sm:$0xff]
    %v388 = vld [vmem:[#allocation2 + $0x88] sm:$0xff]
    %v390 = vsel %vm191, %v370, 0
    %392 = vmatprep.subr.mxu0 %v372
    %393 = vmatpush1.msra.mxu0 %v371
    %394 = vmatprep.subr.mxu0 %v374
    %395 = vmatpush1.msra.mxu0 %v373
    %396 = vmatprep.subr.mxu0 %v376
    %397 = vmatpush1.msra.mxu0 %v375
    %398 = vmatprep.subr.mxu0 %v378
    %399 = vmatpush1.msra.mxu0 %v377
    %400 = vmatprep.subr.mxu0 %v380
    %401 = vmatpush1.msra.mxu0 %v379
    %402 = vmatprep.subr.mxu0 %v382
    %403 = vmatpush1.msra.mxu0 %v381
    %404 = vmatprep.subr.mxu0 %v384
    %405 = vmatpush1.msra.mxu0 %v383
    %406 = vmatprep.subr.mxu0 %v386
    %407 = vmatpush1.msra.mxu0 %v385
    %408 = vmatprep.subr.mxu0 %v388
    %409 = vmatpush1.msra.mxu0 %v387
    %410 = vmatprep.subr.mxu0 0.0
    %411 = vmatpush1.msra.mxu0 0.0
    %412 = vmatprep.subr.mxu0 0.0
    %413 = vmatpush1.msra.mxu0 0.0
    %414 = vmatprep.subr.mxu0 0.0
    %415 = vmatpush1.msra.mxu0 0.0
    %416 = vmatprep.subr.mxu0 0.0
    %417 = vmatpush1.msra.mxu0 0.0
    %418 = vmatprep.subr.mxu0 0.0
    %419 = vmatpush1.msra.mxu0 0.0
    %420 = vmatprep.subr.mxu0 0.0
    %421 = vmatpush1.msra.mxu0 0.0
    %422 = vmatprep.subr.mxu0 0.0
    %423 = vmatpush1.msra.mxu0 0.0
    %424 = vmatprep.subr.mxu0 0.0
    %425 = vmatpush1.msra.mxu0 0.0
    %426 = vmatprep.subr.mxu0 0.0
    %427 = vmatpush1.msra.mxu0 0.0
    %428 = vmatprep.subr.mxu0 0.0
    %429 = vmatpush1.msra.mxu0 0.0
    %430 = vmatprep.subr.mxu0 0.0
    %431 = vmatpush1.msra.mxu0 0.0
    %432 = vmatprep.subr.mxu0 0.0
    %433 = vmatpush1.msra.mxu0 0.0
    %434 = vmatprep.subr.mxu0 0.0
    %435 = vmatpush1.msra.mxu0 0.0
    %436 = vmatprep.subr.mxu0 0.0
    %437 = vmatpush1.msra.mxu0 0.0
    %438 = vmatprep.subr.mxu0 0.0
    %439 = vmatpush1.msra.mxu0 0.0
    %440 = vmatprep.subr.mxu0 0.0
    %441 = vmatpush1.msra.mxu0 0.0
    %442 = vmatprep.subr.mxu0 0.0
    %443 = vmatpush1.msra.mxu0 0.0
    %444 = vmatprep.subr.mxu0 0.0
    %445 = vmatpush1.msra.mxu0 0.0
    %446 = vmatprep.subr.mxu0 0.0
    %447 = vmatpush1.msra.mxu0 0.0
    %448 = vmatprep.subr.mxu0 0.0
    %449 = vmatpush1.msra.mxu0 0.0
    %450 = vmatprep.subr.mxu0 0.0
    %451 = vmatpush1.msra.mxu0 0.0
    %452 = vmatprep.subr.mxu0 0.0
    %453 = vmatpush1.msra.mxu0 0.0
    %454 = vmatprep.subr.mxu0 0.0
    %455 = vmatpush1.msra.mxu0 0.0
    %456 = vmatprep.mubr.f32.mxu0 0.0
    %457 = vmatmul.mubr.f32.gmra.mrb[0].mxu0 %v390
    %v458 = vpop.f32.mrb[0].mxu0
    %v459 = vadd.f32 0.0, %v458
    %v460 = vpop.f32.mrb[0].mxu0
    %v461 = vadd.f32 0.0, %v460
    %462 = vdwg.mxu0
    %v463 = vadd.f32 %v459, %v461
    %464 = vadd.xlane.f32.xlu0 %v463
    %v465 = vpop.xlane.xlu0 %464
    %v466 = vmul.f32 %v465, %v269
    %v467 = vmul.f32 %v459, %v459
    %v468 = vmul.f32 %v461, %v461
    %v469 = vadd.f32 %v467, %v468
    %470 = vadd.xlane.f32.xlu0 %v469
    %v471 = vpop.xlane.xlu0 %470
    %v472 = vmul.f32 %v471, %v269
    %v473 = vmul.f32 %v466, %v466
    %v474 = vsub.f32 %v472, %v473
    %v475 = vmax.f32 %v474, 0.0
    %v476 = vsub.f32 %v459, %v466
    %v477 = vsub.f32 %v461, %v466
    %v478 = vadd.f32 %v475, 1e-05
    %v479 = vrsqrt.pop %v478
    %v480 = vmul.f32 %v476, %v479
    %v481 = vmul.f32 %v477, %v479
    %v482 = vadd.f32 %v50, %v480
    %v483 = vadd.f32 %v51, %v481
    %484 = vst [vmem:[#allocation9] sm:$0xff] %v482
    %485 = vst [vmem:[#allocation9 + $0x8] sm:$0xff] %v483
    // Predicated region
    $region26: #{tpu_custom_call.1} parent=1 // pred_check
      _
    $region27: #{tpu_custom_call.1} parent=1 // pred_check_branch
      %487 = sbr.rel (0) target = $region29
    $region28: #{tpu_custom_call.1} parent=1 // pred_region
      %s489 = ssub.s32 256, 256
      %490 = vsyncadd [#allocation5], %s489
      %s492 = sshll.u32 [#allocation9], 4
      %s493 = int_to_ptr.vmem [resolvable:$true] %s492
      %495 = dma.vmem_to_hbm [thread:$0]  %s493, 256, %s3, [#allocation5]
    $region29: #{tpu_custom_call.1} parent=1 // pred_fallthru
      _
    // Predicated region
    $region30: #{tpu_custom_call.1} parent=1 // pred_check
      _
    $region31: #{tpu_custom_call.1} parent=1 // pred_check_branch
      %497 = sbr.rel (0) target = $region33
    $region32: #{tpu_custom_call.1} parent=1 // pred_region
      %498 = dma.done [#allocation5], 256
    $region33: #{tpu_custom_call.1} parent=1 // pred_fallthru
      _
    %499 = vsyncpa [#allocation4], 1
    %500 = vsyncpa [#allocation7], 1
    %501 = vsyncpa [#allocation5], 1

</llo_original>
